<compile_context>
chip_gen: v7x
topology: tpu7x:2x2x1
jax: 0.10.0
libtpu: 0.0.40
codegen_flags: <defaults>
</compile_context>

<pallas_src>
import jax
import jax.numpy as jnp
from jax.experimental import pallas as pl
from jax.experimental.pallas import tpu as pltpu


def _round_up(x, m):
    return ((x + m - 1) // m) * m


# --------------------------------------------------------------------------
# Kernel factory: one batch tile, fused twin-head 3-layer MLP
# (optionally with a masked per-head log-softmax epilogue).
# --------------------------------------------------------------------------
def _make_kernel(apply_log_softmax, num_atoms, atom_off):
    def kernel(obs_ref, act_ref,
               w1o_ref, w1a_ref, b1_ref,
               w2_ref, b2_ref,
               w3_ref, b3_ref,
               out_ref):
        # Layer 1: split-K accumulation (obs part + act part), both heads in one
        # 128-lane slab.
        h = (jnp.dot(obs_ref[...], w1o_ref[...], preferred_element_type=jnp.float32)
             + jnp.dot(act_ref[...], w1a_ref[...], preferred_element_type=jnp.float32)
             + b1_ref[...])
        h = jnp.maximum(h, 0.0)                                       # ReLU
        # Layer 2: [tb,128] @ [128,128] block-diagonal (no cross-talk).
        h = jnp.dot(h, w2_ref[...], preferred_element_type=jnp.float32) + b2_ref[...]
        h = jnp.maximum(h, 0.0)                                       # ReLU
        # Layer 3: [tb,128] @ [128,128] -> lane-dense [tb,128] logits slab.
        z = jnp.dot(h, w3_ref[...], preferred_element_type=jnp.float32) + b3_ref[...]

        if apply_log_softmax:
            # Masked per-head log-softmax over the true atom lanes (EUP/XLU work,
            # essentially free next to the MXU passes; saves an HBM round trip).
            lane = jax.lax.broadcasted_iota(jnp.int32, z.shape, dimension=1)
            mask_a = lane < num_atoms
            mask_b = (lane >= atom_off) & (lane < atom_off + num_atoms)
            neg_inf = jnp.float32(-jnp.inf)
            m_a = jnp.max(jnp.where(mask_a, z, neg_inf), axis=-1, keepdims=True)
            m_b = jnp.max(jnp.where(mask_b, z, neg_inf), axis=-1, keepdims=True)
            s_a = jnp.sum(jnp.where(mask_a, jnp.exp(z - m_a), 0.0), axis=-1, keepdims=True)
            s_b = jnp.sum(jnp.where(mask_b, jnp.exp(z - m_b), 0.0), axis=-1, keepdims=True)
            lp_a = z - m_a - jnp.log(s_a)
            lp_b = z - m_b - jnp.log(s_b)
            # Padded lanes hold junk; they are sliced away outside the kernel.
            z = jnp.where(mask_a, lp_a, lp_b)

        out_ref[...] = z
    return kernel


# --------------------------------------------------------------------------
# Parameter packing: both heads into one lane slab (done once, outside kernel).
# --------------------------------------------------------------------------
def pack_params(params, obs_dim, act_dim, mid_dim, num_atoms):
    in_dim = obs_dim + act_dim
    hid_total = _round_up(2 * mid_dim, 128)          # 128 for mid_dim=32
    hid_off = max(mid_dim, hid_total // 2)           # head-B hidden lane offset (64)
    atom_total = _round_up(2 * num_atoms, 128)       # 128 for num_atoms=51
    atom_off = max(num_atoms, atom_total // 2)       # head-B atom lane offset (64)

    def slab(shape, placements):
        out = jnp.zeros(shape, jnp.float32)
        for (r0, c0), blk in placements:
            blk = jnp.asarray(blk, jnp.float32)
            out = out.at[r0:r0 + blk.shape[0], c0:c0 + blk.shape[1]].set(blk)
        return out

    # Layer 1: [in_dim, hid_total]; head-A cols 0:mid, head-B cols hid_off:hid_off+mid.
    w1 = slab((in_dim, hid_total), [((0, 0), params["w1a"]), ((0, hid_off), params["w1b"])])
    b1 = slab((1, hid_total), [((0, 0), params["b1a"]), ((0, hid_off), params["b1b"])])
    w1_obs, w1_act = w1[:obs_dim, :], w1[obs_dim:, :]

    # Layer 2: block-diagonal inside the slab (zero cross-talk between heads).
    w2 = slab((hid_total, hid_total),
              [((0, 0), params["w2a"]), ((hid_off, hid_off), params["w2b"])])
    b2 = slab((1, hid_total), [((0, 0), params["b2a"]), ((0, hid_off), params["b2b"])])

    # Layer 3: head-A atoms at cols 0:num_atoms, head-B at cols atom_off:atom_off+num_atoms.
    w3 = slab((hid_total, atom_total),
              [((0, 0), params["w3a"]), ((hid_off, atom_off), params["w3b"])])
    b3 = slab((1, atom_total), [((0, 0), params["b3a"]), ((0, atom_off), params["b3b"])])

    return dict(w1_obs=w1_obs, w1_act=w1_act, b1=b1, w2=w2, b2=b2, w3=w3, b3=b3,
                meta=dict(num_atoms=int(num_atoms), atom_off=int(atom_off),
                          atom_total=int(atom_total), hid_total=int(hid_total)))


# --------------------------------------------------------------------------
# JAX wrapper: batch-tiled grid, VMEM-resident weights, lane-dense output.
# --------------------------------------------------------------------------
def _critic_pallas(obs, act, packed, *, apply_log_softmax, tile_b):
    obs = obs.astype(jnp.float32)
    act = act.astype(jnp.float32)
    batch, obs_dim = obs.shape
    act_dim = act.shape[1]
    meta = packed["meta"]
    num_atoms, atom_off = meta["num_atoms"], meta["atom_off"]
    hid_total, atom_total = meta["hid_total"], meta["atom_total"]

    # ---- Batch tiling ------------------------------------------------------
    tb = min(tile_b, _round_up(batch, 8))
    if batch >= 256:
        # Keep at least 2 grid steps at large batch so v7x can shard the
        # "parallel" axis across both TensorCores (no-op on v5e/v6e).
        tb = min(tb, _round_up(-(-batch // 2), 8))
    padded_batch = _round_up(batch, tb)
    if padded_batch != batch:
        obs = jnp.pad(obs, ((0, padded_batch - batch), (0, 0)))
        act = jnp.pad(act, ((0, padded_batch - batch), (0, 0)))
    grid = (padded_batch // tb,)

    vmem = pltpu.MemorySpace.VMEM

    def tiled(shape):     # batch-tiled activation / output blocks
        return pl.BlockSpec(shape, lambda i: (i, 0), memory_space=vmem)

    def resident(shape):  # full-block weights, constant index_map -> VMEM-resident
        return pl.BlockSpec(shape, lambda i: (0, 0), memory_space=vmem)

    weights = (packed["w1_obs"], packed["w1_act"], packed["b1"],
               packed["w2"], packed["b2"], packed["w3"], packed["b3"])
    in_specs = [tiled((tb, obs_dim)), tiled((tb, act_dim))] + \
               [resident(w.shape) for w in weights]

    flops = 2 * padded_batch * ((obs_dim + act_dim) * hid_total
                                + hid_total * hid_total + hid_total * atom_total)
    transcendentals = padded_batch * (atom_total + 4) if apply_log_softmax else 0
    bytes_accessed = 4 * (padded_batch * (obs_dim + act_dim + atom_total)
                          + sum(int(w.size) for w in weights))

    kernel = _make_kernel(apply_log_softmax, num_atoms, atom_off)

    # NOTE: pipeline depth could be raised via pipeline_mode=pl.Buffered(3) on the
    # tiled specs if profiling shows exposed output-store DMA; default 2 is fine here.
    out = pl.pallas_call(
        kernel,
        out_shape=jax.ShapeDtypeStruct((padded_batch, atom_total), jnp.float32),
        grid=grid,
        in_specs=in_specs,
        out_specs=tiled((tb, atom_total)),
        compiler_params=pltpu.CompilerParams(
            dimension_semantics=("parallel",)),
        cost_estimate=pl.CostEstimate(flops=flops, transcendentals=transcendentals,
                                      bytes_accessed=bytes_accessed),
    )(obs, act, *weights)

    # Slice back to true batch and true atom count (padding columns are exact zeros
    # for forward; for log-probs the padded lanes are simply discarded).
    o1 = out[:batch, :num_atoms]
    o2 = out[:batch, atom_off:atom_off + num_atoms]
    return o1, o2


def critic_model_dist_forward(obs, act, packed, *, tile_b=512):
    """Equivalent of CriticModelDist.forward -> (z1, z2)."""
    return _critic_pallas(obs, act, packed, apply_log_softmax=False, tile_b=tile_b)


def critic_model_dist_get_probs(obs, act, packed, *, tile_b=512):
    """Equivalent of CriticModelDist.get_probs -> (log_softmax(z1), log_softmax(z2))."""
    return _critic_pallas(obs, act, packed, apply_log_softmax=True, tile_b=tile_b)


# --------------------------------------------------------------------------
# Init + pure-JAX reference for verification.
# --------------------------------------------------------------------------
def init_params(key, obs_dim, act_dim, mid_dim, num_atoms):
    """PyTorch-Linear-style init; weights stored [in, out]."""
    in_dim = obs_dim + act_dim

    def linear(k, fan_in, fan_out):
        kw, kb = jax.random.split(k)
        bound = 1.0 / jnp.sqrt(float(fan_in))
        w = jax.random.uniform(kw, (fan_in, fan_out), jnp.float32, -bound, bound)
        b = jax.random.uniform(kb, (1, fan_out), jnp.float32, -bound, bound)
        return w, b

    keys = jax.random.split(key, 6)
    w1a, b1a = linear(keys[0], in_dim, mid_dim)
    w2a, b2a = linear(keys[1], mid_dim, mid_dim)
    w3a, b3a = linear(keys[2], mid_dim, num_atoms)
    w1b, b1b = linear(keys[3], in_dim, mid_dim)
    w2b, b2b = linear(keys[4], mid_dim, mid_dim)
    w3b, b3b = linear(keys[5], mid_dim, num_atoms)
    return dict(w1a=w1a, b1a=b1a, w2a=w2a, b2a=b2a, w3a=w3a, b3a=b3a,
                w1b=w1b, b1b=b1b, w2b=w2b, b2b=b2b, w3b=w3b, b3b=b3b)


def reference_forward(obs, act, params):
    x = jnp.concatenate((obs, act), axis=1).astype(jnp.float32)

    def mlp(w1, b1, w2, b2, w3, b3):
        h = jnp.maximum(x @ w1 + b1, 0.0)
        h = jnp.maximum(h @ w2 + b2, 0.0)
        return h @ w3 + b3

    z1 = mlp(params["w1a"], params["b1a"], params["w2a"], params["b2a"],
             params["w3a"], params["b3a"])
    z2 = mlp(params["w1b"], params["b1b"], params["w2b"], params["b2b"],
             params["w3b"], params["b3b"])
    return z1, z2


if __name__ == "__main__":
    # Small shapes consistent with the module's forward.
    batch = 8
    obs_dim = 16
    act_dim = 8
    mid_dim = 32
    num_atoms = 51
    v_min, v_max = -10.0, 10.0
    z_atoms = jnp.linspace(v_min, v_max, num_atoms)  # parity with __init__ (unused in forward)

    key = jax.random.PRNGKey(0)
    k_obs, k_act, k_par = jax.random.split(key, 3)
    obs = jax.random.normal(k_obs, (batch, obs_dim), jnp.float32)
    act = jax.random.normal(k_act, (batch, act_dim), jnp.float32)
    params = init_params(k_par, obs_dim, act_dim, mid_dim, num_atoms)
    packed = pack_params(params, obs_dim, act_dim, mid_dim, num_atoms)

    z1, z2 = critic_model_dist_forward(obs, act, packed)
    lp1, lp2 = critic_model_dist_get_probs(obs, act, packed)
    jax.block_until_ready((z1, z2, lp1, lp2))

    z1_ref, z2_ref = reference_forward(obs, act, params)
    assert z1.shape == (batch, num_atoms) and z2.shape == (batch, num_atoms)
    assert jnp.allclose(z1, z1_ref, atol=1e-4, rtol=1e-4)
    assert jnp.allclose(z2, z2_ref, atol=1e-4, rtol=1e-4)
    assert jnp.allclose(lp1, jax.nn.log_softmax(z1_ref, axis=1), atol=1e-4, rtol=1e-4)
    assert jnp.allclose(lp2, jax.nn.log_softmax(z2_ref, axis=1), atol=1e-4, rtol=1e-4)

    # TODO(synk): optional bf16 MXU operands (f32 accumulate) would speed up the
    # MXU-bound regime at very large batch but break the 1e-4 fp32 parity assert.
    print("KERNEL_OK")
</pallas_src>

<mosaic_0001>
module attributes {stable_mosaic.version = 11 : i64} {
  func.func @kernel(%arg0: i32, %arg1: memref<8x16xf32, #tpu.memory_space<vmem>>, %arg2: memref<8x8xf32, #tpu.memory_space<vmem>>, %arg3: memref<16x128xf32, #tpu.memory_space<vmem>>, %arg4: memref<8x128xf32, #tpu.memory_space<vmem>>, %arg5: memref<1x128xf32, #tpu.memory_space<vmem>>, %arg6: memref<128x128xf32, #tpu.memory_space<vmem>>, %arg7: memref<1x128xf32, #tpu.memory_space<vmem>>, %arg8: memref<128x128xf32, #tpu.memory_space<vmem>>, %arg9: memref<1x128xf32, #tpu.memory_space<vmem>>, %arg10: memref<8x128xf32, #tpu.memory_space<vmem>>) attributes {dimension_semantics = [#tpu.dimension_semantics<parallel>], iteration_bounds = array<i64: 1>, scalar_prefetch = 0 : i64, scratch_operands = 0 : i64, tpu.core_type = #tpu.core_type<tc>, window_params = [{transform_indices = @transform_0, window_bounds = array<i64: 8, 16>}, {transform_indices = @transform_1, window_bounds = array<i64: 8, 8>}, {pipeline_mode = #tpu.pipeline_mode<synchronous>, transform_indices = @transform_2, window_bounds = array<i64: 16, 128>}, {pipeline_mode = #tpu.pipeline_mode<synchronous>, transform_indices = @transform_3, window_bounds = array<i64: 8, 128>}, {pipeline_mode = #tpu.pipeline_mode<synchronous>, transform_indices = @transform_4, window_bounds = array<i64: 1, 128>}, {pipeline_mode = #tpu.pipeline_mode<synchronous>, transform_indices = @transform_5, window_bounds = array<i64: 128, 128>}, {pipeline_mode = #tpu.pipeline_mode<synchronous>, transform_indices = @transform_6, window_bounds = array<i64: 1, 128>}, {pipeline_mode = #tpu.pipeline_mode<synchronous>, transform_indices = @transform_7, window_bounds = array<i64: 128, 128>}, {pipeline_mode = #tpu.pipeline_mode<synchronous>, transform_indices = @transform_8, window_bounds = array<i64: 1, 128>}, {transform_indices = @transform_9, window_bounds = array<i64: 8, 128>}]} {
    %c0 = arith.constant 0 : index
    %c0_0 = arith.constant 0 : index
    %0 = vector.load %arg1[%c0, %c0_0] : memref<8x16xf32, #tpu.memory_space<vmem>>, vector<8x16xf32>
    %c0_1 = arith.constant 0 : index
    %c0_2 = arith.constant 0 : index
    %1 = vector.load %arg3[%c0_1, %c0_2] : memref<16x128xf32, #tpu.memory_space<vmem>>, vector<16x128xf32>
    %cst = arith.constant dense<0.000000e+00> : vector<8x128xf32>
    %2 = tpu.matmul %0, %1, %cst {dimension_numbers = #tpu.dot_dimension_numbers<[1], [0], [0], [1], [0, 0, 1, 1], [], []>} : vector<8x16xf32>, vector<16x128xf32>, vector<8x128xf32> -> vector<8x128xf32>
    %c0_3 = arith.constant 0 : index
    %c0_4 = arith.constant 0 : index
    %3 = vector.load %arg2[%c0_3, %c0_4] : memref<8x8xf32, #tpu.memory_space<vmem>>, vector<8x8xf32>
    %c0_5 = arith.constant 0 : index
    %c0_6 = arith.constant 0 : index
    %4 = vector.load %arg4[%c0_5, %c0_6] : memref<8x128xf32, #tpu.memory_space<vmem>>, vector<8x128xf32>
    %cst_7 = arith.constant dense<0.000000e+00> : vector<8x128xf32>
    %5 = tpu.matmul %3, %4, %cst_7 {dimension_numbers = #tpu.dot_dimension_numbers<[1], [0], [0], [1], [0, 0, 1, 1], [], []>} : vector<8x8xf32>, vector<8x128xf32>, vector<8x128xf32> -> vector<8x128xf32>
    %6 = arith.addf %2, %5 : vector<8x128xf32>
    %c0_8 = arith.constant 0 : index
    %c0_9 = arith.constant 0 : index
    %7 = vector.load %arg5[%c0_8, %c0_9] : memref<1x128xf32, #tpu.memory_space<vmem>>, vector<1x128xf32>
    %8 = vector.broadcast %7 : vector<1x128xf32> to vector<8x128xf32>
    %9 = arith.addf %6, %8 : vector<8x128xf32>
    %cst_10 = arith.constant 0.000000e+00 : f32
    %10 = vector.broadcast %cst_10 : f32 to vector<8x128xf32>
    %11 = arith.maximumf %9, %10 : vector<8x128xf32>
    %c0_11 = arith.constant 0 : index
    %c0_12 = arith.constant 0 : index
    %12 = vector.load %arg6[%c0_11, %c0_12] : memref<128x128xf32, #tpu.memory_space<vmem>>, vector<128x128xf32>
    %cst_13 = arith.constant dense<0.000000e+00> : vector<8x128xf32>
    %13 = tpu.matmul %11, %12, %cst_13 {dimension_numbers = #tpu.dot_dimension_numbers<[1], [0], [0], [1], [0, 0, 1, 1], [], []>} : vector<8x128xf32>, vector<128x128xf32>, vector<8x128xf32> -> vector<8x128xf32>
    %c0_14 = arith.constant 0 : index
    %c0_15 = arith.constant 0 : index
    %14 = vector.load %arg7[%c0_14, %c0_15] : memref<1x128xf32, #tpu.memory_space<vmem>>, vector<1x128xf32>
    %15 = vector.broadcast %14 : vector<1x128xf32> to vector<8x128xf32>
    %16 = arith.addf %13, %15 : vector<8x128xf32>
    %cst_16 = arith.constant 0.000000e+00 : f32
    %17 = vector.broadcast %cst_16 : f32 to vector<8x128xf32>
    %18 = arith.maximumf %16, %17 : vector<8x128xf32>
    %c0_17 = arith.constant 0 : index
    %c0_18 = arith.constant 0 : index
    %19 = vector.load %arg8[%c0_17, %c0_18] : memref<128x128xf32, #tpu.memory_space<vmem>>, vector<128x128xf32>
    %cst_19 = arith.constant dense<0.000000e+00> : vector<8x128xf32>
    %20 = tpu.matmul %18, %19, %cst_19 {dimension_numbers = #tpu.dot_dimension_numbers<[1], [0], [0], [1], [0, 0, 1, 1], [], []>} : vector<8x128xf32>, vector<128x128xf32>, vector<8x128xf32> -> vector<8x128xf32>
    %c0_20 = arith.constant 0 : index
    %c0_21 = arith.constant 0 : index
    %21 = vector.load %arg9[%c0_20, %c0_21] : memref<1x128xf32, #tpu.memory_space<vmem>>, vector<1x128xf32>
    %22 = vector.broadcast %21 : vector<1x128xf32> to vector<8x128xf32>
    %23 = arith.addf %20, %22 : vector<8x128xf32>
    %c0_22 = arith.constant 0 : index
    %c0_23 = arith.constant 0 : index
    %24 = vector.load %arg10[%c0_22, %c0_23] : memref<8x128xf32, #tpu.memory_space<vmem>>, vector<8x128xf32>
    tpu.vector_store %arg10[%c0_22, %c0_23], %23 {strides = array<i32>} : memref<8x128xf32, #tpu.memory_space<vmem>>, vector<8x128xf32>,
    return
  }
  func.func @transform_0(%arg0: i32) -> (i32, i32) {
    %c0_i32 = arith.constant 0 : i32
    %c0_i32_0 = arith.constant 0 : i32
    return %arg0, %c0_i32 : i32, i32
  }
  func.func @transform_1(%arg0: i32) -> (i32, i32) {
    %c0_i32 = arith.constant 0 : i32
    %c0_i32_0 = arith.constant 0 : i32
    return %arg0, %c0_i32 : i32, i32
  }
  func.func @transform_2(%arg0: i32) -> (i32, i32) {
    %c0_i32 = arith.constant 0 : i32
    %c0_i32_0 = arith.constant 0 : i32
    %c0_i32_1 = arith.constant 0 : i32
    return %c0_i32, %c0_i32_0 : i32, i32
  }
  func.func @transform_3(%arg0: i32) -> (i32, i32) {
    %c0_i32 = arith.constant 0 : i32
    %c0_i32_0 = arith.constant 0 : i32
    %c0_i32_1 = arith.constant 0 : i32
    return %c0_i32, %c0_i32_0 : i32, i32
  }
  func.func @transform_4(%arg0: i32) -> (i32, i32) {
    %c0_i32 = arith.constant 0 : i32
    %c0_i32_0 = arith.constant 0 : i32
    %c0_i32_1 = arith.constant 0 : i32
    return %c0_i32, %c0_i32_0 : i32, i32
  }
  func.func @transform_5(%arg0: i32) -> (i32, i32) {
    %c0_i32 = arith.constant 0 : i32
    %c0_i32_0 = arith.constant 0 : i32
    %c0_i32_1 = arith.constant 0 : i32
    return %c0_i32, %c0_i32_0 : i32, i32
  }
  func.func @transform_6(%arg0: i32) -> (i32, i32) {
    %c0_i32 = arith.constant 0 : i32
    %c0_i32_0 = arith.constant 0 : i32
    %c0_i32_1 = arith.constant 0 : i32
    return %c0_i32, %c0_i32_0 : i32, i32
  }
  func.func @transform_7(%arg0: i32) -> (i32, i32) {
    %c0_i32 = arith.constant 0 : i32
    %c0_i32_0 = arith.constant 0 : i32
    %c0_i32_1 = arith.constant 0 : i32
    return %c0_i32, %c0_i32_0 : i32, i32
  }
  func.func @transform_8(%arg0: i32) -> (i32, i32) {
    %c0_i32 = arith.constant 0 : i32
    %c0_i32_0 = arith.constant 0 : i32
    %c0_i32_1 = arith.constant 0 : i32
    return %c0_i32, %c0_i32_0 : i32, i32
  }
  func.func @transform_9(%arg0: i32) -> (i32, i32) {
    %c0_i32 = arith.constant 0 : i32
    %c0_i32_0 = arith.constant 0 : i32
    return %arg0, %c0_i32 : i32, i32
  }
}

</mosaic_0001>

<llo_original>
// kernel: tpu_custom_call.1
$region0: #{tpu_custom_call.1}
  #allocation0 [shape = 'u32[]', space=smem, size = 0x4, offset = 0x4, fixed_abs, tag = 'smem constant byte address 0x4 - core index']
  #allocation1 [shape = 'u32[144,128]{1,0:T(1,128)}', space=vmem, size = 0x12000, scoped, tag = 'internal scratch']
  %s0 = inlined_call_operand.hbm [shape: f32[8,16], index: 0, kind: input, shape index: {}]
  %s1 = inlined_call_operand.hbm [shape: f32[8,8], index: 1, kind: input, shape index: {}]
  %s2 = inlined_call_operand.hbm [shape: f32[16,128], index: 2, kind: input, shape index: {}]
  %s3 = inlined_call_operand.vmem [shape: f32[8,128], index: 3, kind: input, shape index: {}]
  %s4 = inlined_call_operand.vmem [shape: f32[1,128], index: 4, kind: input, shape index: {}]
  %s5 = inlined_call_operand.hbm [shape: f32[128,128], index: 5, kind: input, shape index: {}]
  %s6 = inlined_call_operand.vmem [shape: f32[1,128], index: 6, kind: input, shape index: {}]
  %s7 = inlined_call_operand.hbm [shape: f32[128,128], index: 7, kind: input, shape index: {}]
  %s8 = inlined_call_operand.vmem [shape: f32[1,128], index: 8, kind: input, shape index: {}]
  %s9 = inlined_call_operand.hbm [shape: f32[8,128], index: 9, kind: output, shape index: {}]
  %s10 = sld [smem:[#allocation0]]
  $region66: #{tpu_custom_call.1} parent=0
    _
  %s12 = ssub.s32 1, %s10
  %s13 = scalar_select 0, %s12, %s10
  $region1: #{tpu_custom_call.1} parent=0
    #allocation2 [shape = 'u8[4096]{0}', space=vmem, size = 0x1000, scoped, tag = 'input window, operand 0, single buffered']
    #allocation3 [shape = 's32[1]{0}', space=sflag, size = 0x4, scoped, tag = 'scoped memory for tpu_custom_call.1']
    #allocation4 [shape = 's32[1]{0}', space=sflag, size = 0x4, scoped, tag = 'scoped memory for tpu_custom_call.1']
    #allocation5 [shape = 'u8[4096]{0}', space=vmem, size = 0x1000, scoped, tag = 'input window, operand 1, single buffered']
    #allocation6 [shape = 's32[1]{0}', space=sflag, size = 0x4, scoped, tag = 'scoped memory for tpu_custom_call.1']
    #allocation7 [shape = 'u8[8192]{0}', space=vmem, size = 0x2000, scoped, tag = 'input window, operand 2, single buffered']
    #allocation8 [shape = 'u8[65536]{0}', space=vmem, size = 0x10000, scoped, tag = 'input window, operand 5, single buffered']
    #allocation9 [shape = 's32[1]{0}', space=sflag, size = 0x4, scoped, tag = 'scoped memory for tpu_custom_call.1']
    #allocation10 [shape = 'u8[65536]{0}', space=vmem, size = 0x10000, scoped, tag = 'input window, operand 7, single buffered']
    #allocation11 [shape = 'u8[4096]{0}', space=vmem, size = 0x1000, scoped, tag = 'output window, operand 0, single buffered']
    %14 = vsyncpa [#allocation3], 0
    %15 = vsyncpa [#allocation6], 0
    %16 = vsyncpa [#allocation9], 0
    %17 = vsyncpa [#allocation4], 0
    // Predicated region
    $region2: #{tpu_custom_call.1} parent=1 // pred_check
      _
    $region3: #{tpu_custom_call.1} parent=1 // pred_check_branch
      %19 = sbr.rel (0) target = $region5
    $region4: #{tpu_custom_call.1} parent=1 // pred_region
      %s21 = ssub.s32 128, 128
      %22 = vsyncadd [#allocation3], %s21
      %s24 = sshll.u32 [#allocation2], 4
      %s25 = int_to_ptr.vmem [resolvable:$true] %s24
      %27 = dma.hbm_to_vmem [thread:$0]  %s0, 128, %s25, [#allocation3]
    $region5: #{tpu_custom_call.1} parent=1 // pred_fallthru
      _
    // Predicated region
    $region6: #{tpu_custom_call.1} parent=1 // pred_check
      _
    $region7: #{tpu_custom_call.1} parent=1 // pred_check_branch
      %29 = sbr.rel (0) target = $region9
    $region8: #{tpu_custom_call.1} parent=1 // pred_region
      %s31 = ssub.s32 128, 128
      %32 = vsyncadd [#allocation6], %s31
      %s34 = sshll.u32 [#allocation5], 4
      %s35 = int_to_ptr.vmem [resolvable:$true] %s34
      %37 = dma.hbm_to_vmem [thread:$0]  %s1, 128, %s35, [#allocation6]
    $region9: #{tpu_custom_call.1} parent=1 // pred_fallthru
      _
    // Predicated region
    $region10: #{tpu_custom_call.1} parent=1 // pred_check
      _
    $region11: #{tpu_custom_call.1} parent=1 // pred_check_branch
      %39 = sbr.rel (0) target = $region13
    $region12: #{tpu_custom_call.1} parent=1 // pred_region
      %s41 = ssub.s32 256, 256
      %42 = vsyncadd [#allocation6], %s41
      %s43 = sshll.u32 [#allocation7], 4
      %s44 = int_to_ptr.vmem [resolvable:$true] %s43
      %49 = dma.hbm_to_vmem [thread:$0]  %s2, 256, %s44, [#allocation6], 128, 128, 8
    $region13: #{tpu_custom_call.1} parent=1 // pred_fallthru
      _
    // Predicated region
    $region14: #{tpu_custom_call.1} parent=1 // pred_check
      _
    $region15: #{tpu_custom_call.1} parent=1 // pred_check_branch
      %51 = sbr.rel (0) target = $region17
    $region16: #{tpu_custom_call.1} parent=1 // pred_region
      _
    $region17: #{tpu_custom_call.1} parent=1 // pred_fallthru
      _
    // Predicated region
    $region18: #{tpu_custom_call.1} parent=1 // pred_check
      _
    $region19: #{tpu_custom_call.1} parent=1 // pred_check_branch
      %53 = sbr.rel (0) target = $region21
    $region20: #{tpu_custom_call.1} parent=1 // pred_region
      _
    $region21: #{tpu_custom_call.1} parent=1 // pred_fallthru
      _
    // Predicated region
    $region22: #{tpu_custom_call.1} parent=1 // pred_check
      _
    $region23: #{tpu_custom_call.1} parent=1 // pred_check_branch
      %55 = sbr.rel (0) target = $region25
    $region24: #{tpu_custom_call.1} parent=1 // pred_region
      %s57 = ssub.s32 2048, 2048
      %58 = vsyncadd [#allocation9], %s57
      %s59 = sshll.u32 [#allocation8], 4
      %s60 = int_to_ptr.vmem [resolvable:$true] %s59
      %65 = dma.hbm_to_vmem [thread:$0]  %s5, 2048, %s60, [#allocation9], 128, 128, 8
    $region25: #{tpu_custom_call.1} parent=1 // pred_fallthru
      _
    // Predicated region
    $region26: #{tpu_custom_call.1} parent=1 // pred_check
      _
    $region27: #{tpu_custom_call.1} parent=1 // pred_check_branch
      %67 = sbr.rel (0) target = $region29
    $region28: #{tpu_custom_call.1} parent=1 // pred_region
      _
    $region29: #{tpu_custom_call.1} parent=1 // pred_fallthru
      _
    // Predicated region
    $region30: #{tpu_custom_call.1} parent=1 // pred_check
      _
    $region31: #{tpu_custom_call.1} parent=1 // pred_check_branch
      %69 = sbr.rel (0) target = $region33
    $region32: #{tpu_custom_call.1} parent=1 // pred_region
      %s71 = ssub.s32 2048, 2048
      %72 = vsyncadd [#allocation9], %s71
      %s73 = sshll.u32 [#allocation10], 4
      %s74 = int_to_ptr.vmem [resolvable:$true] %s73
      %79 = dma.hbm_to_vmem [thread:$0]  %s7, 2048, %s74, [#allocation9], 128, 128, 8
    $region33: #{tpu_custom_call.1} parent=1 // pred_fallthru
      _
    // Predicated region
    $region34: #{tpu_custom_call.1} parent=1 // pred_check
      _
    $region35: #{tpu_custom_call.1} parent=1 // pred_check_branch
      %81 = sbr.rel (0) target = $region37
    $region36: #{tpu_custom_call.1} parent=1 // pred_region
      _
    $region37: #{tpu_custom_call.1} parent=1 // pred_fallthru
      _
    // Predicated region
    $region38: #{tpu_custom_call.1} parent=1 // pred_check
      _
    $region39: #{tpu_custom_call.1} parent=1 // pred_check_branch
      %83 = sbr.rel (0) target = $region41
    $region40: #{tpu_custom_call.1} parent=1 // pred_region
      %84 = dma.done [#allocation3], 128
    $region41: #{tpu_custom_call.1} parent=1 // pred_fallthru
      _
    // Predicated region
    $region42: #{tpu_custom_call.1} parent=1 // pred_check
      _
    $region43: #{tpu_custom_call.1} parent=1 // pred_check_branch
      %86 = sbr.rel (0) target = $region45
    $region44: #{tpu_custom_call.1} parent=1 // pred_region
      %87 = dma.done [#allocation6], 128
    $region45: #{tpu_custom_call.1} parent=1 // pred_fallthru
      _
    // Predicated region
    $region46: #{tpu_custom_call.1} parent=1 // pred_check
      _
    $region47: #{tpu_custom_call.1} parent=1 // pred_check_branch
      %89 = sbr.rel (0) target = $region49
    $region48: #{tpu_custom_call.1} parent=1 // pred_region
      %90 = dma.done [#allocation6], 256
    $region49: #{tpu_custom_call.1} parent=1 // pred_fallthru
      _
    // Predicated region
    $region50: #{tpu_custom_call.1} parent=1 // pred_check
      _
    $region51: #{tpu_custom_call.1} parent=1 // pred_check_branch
      %92 = sbr.rel (0) target = $region53
    $region52: #{tpu_custom_call.1} parent=1 // pred_region
      %93 = dma.done [#allocation9], 2048
    $region53: #{tpu_custom_call.1} parent=1 // pred_fallthru
      _
    // Predicated region
    $region54: #{tpu_custom_call.1} parent=1 // pred_check
      _
    $region55: #{tpu_custom_call.1} parent=1 // pred_check_branch
      %95 = sbr.rel (0) target = $region57
    $region56: #{tpu_custom_call.1} parent=1 // pred_region
      %96 = dma.done [#allocation9], 2048
    $region57: #{tpu_custom_call.1} parent=1 // pred_fallthru
      _
    %v97 = vld [vmem:[#allocation2] sm:$0xff]
    %v98 = vld [vmem:[#allocation7] sm:$0xff]
    %v99 = vld [vmem:[#allocation7 + $0x8] sm:$0xff]
    %v100 = vld [vmem:[#allocation5] sm:$0xff]
    %v101 = vld [vmem:[%s3] sm:$0xff]
    %vm102 = vcmask 64512
    %v104 = vsel %vm102, %v100, 0
    %106 = vmatprep.subr.mxu0 0.0
    %107 = vmatpush1.msra.mxu0 %v101
    %108 = vmatprep.subr.mxu0 0.0
    %109 = vmatpush1.msra.mxu0 0.0
    %110 = vmatprep.subr.mxu0 0.0
    %111 = vmatpush1.msra.mxu0 0.0
    %112 = vmatprep.subr.mxu0 0.0
    %113 = vmatpush1.msra.mxu0 0.0
    %114 = vmatprep.subr.mxu0 0.0
    %115 = vmatpush1.msra.mxu0 0.0
    %116 = vmatprep.subr.mxu0 0.0
    %117 = vmatpush1.msra.mxu0 0.0
    %118 = vmatprep.subr.mxu0 0.0
    %119 = vmatpush1.msra.mxu0 0.0
    %120 = vmatprep.subr.mxu0 0.0
    %121 = vmatpush1.msra.mxu0 0.0
    %122 = vmatprep.subr.mxu0 0.0
    %123 = vmatpush1.msra.mxu0 0.0
    %124 = vmatprep.subr.mxu0 0.0
    %125 = vmatpush1.msra.mxu0 0.0
    %126 = vmatprep.subr.mxu0 0.0
    %127 = vmatpush1.msra.mxu0 0.0
    %128 = vmatprep.subr.mxu0 0.0
    %129 = vmatpush1.msra.mxu0 0.0
    %130 = vmatprep.subr.mxu0 0.0
    %131 = vmatpush1.msra.mxu0 0.0
    %132 = vmatprep.subr.mxu0 0.0
    %133 = vmatpush1.msra.mxu0 0.0
    %134 = vmatprep.subr.mxu0 0.0
    %135 = vmatpush1.msra.mxu0 0.0
    %136 = vmatprep.subr.mxu0 0.0
    %137 = vmatpush1.msra.mxu0 0.0
    %138 = vmatprep.subr.mxu0 0.0
    %139 = vmatpush1.msra.mxu0 0.0
    %140 = vmatprep.subr.mxu0 0.0
    %141 = vmatpush1.msra.mxu0 0.0
    %142 = vmatprep.subr.mxu0 0.0
    %143 = vmatpush1.msra.mxu0 0.0
    %144 = vmatprep.subr.mxu0 0.0
    %145 = vmatpush1.msra.mxu0 0.0
    %146 = vmatprep.subr.mxu0 0.0
    %147 = vmatpush1.msra.mxu0 0.0
    %148 = vmatprep.subr.mxu0 0.0
    %149 = vmatpush1.msra.mxu0 0.0
    %150 = vmatprep.subr.mxu0 0.0
    %151 = vmatpush1.msra.mxu0 0.0
    %152 = vmatprep.subr.mxu0 0.0
    %153 = vmatpush1.msra.mxu0 0.0
    %154 = vmatprep.subr.mxu0 0.0
    %155 = vmatpush1.msra.mxu0 0.0
    %156 = vmatprep.subr.mxu0 0.0
    %157 = vmatpush1.msra.mxu0 0.0
    %158 = vmatprep.subr.mxu0 0.0
    %159 = vmatpush1.msra.mxu0 0.0
    %160 = vmatprep.subr.mxu0 0.0
    %161 = vmatpush1.msra.mxu0 0.0
    %162 = vmatprep.subr.mxu0 0.0
    %163 = vmatpush1.msra.mxu0 0.0
    %164 = vmatprep.subr.mxu0 0.0
    %165 = vmatpush1.msra.mxu0 0.0
    %166 = vmatprep.subr.mxu0 0.0
    %167 = vmatpush1.msra.mxu0 0.0
    %168 = vmatprep.subr.mxu0 0.0
    %169 = vmatpush1.msra.mxu0 0.0
    %170 = vmatprep.mubr.f32.mxu0 0.0
    %171 = vmatmul.mubr.f32.gmra.mrb[0].mxu0 %v104
    %v172 = vpop.f32.mrb[0].mxu0
    %v173 = vadd.f32 0.0, %v172
    %v174 = vpop.f32.mrb[0].mxu0
    %175 = vdwg.mxu0
    %vm176 = vcmask 130048
    %v178 = vsel %vm176, %v97, 0
    %180 = vmatprep.subr.mxu0 0.0
    %181 = vmatpush1.msra.mxu0 %v98
    %182 = vmatprep.subr.mxu0 0.0
    %183 = vmatpush1.msra.mxu0 %v99
    %184 = vmatprep.subr.mxu0 0.0
    %185 = vmatpush1.msra.mxu0 0.0
    %186 = vmatprep.subr.mxu0 0.0
    %187 = vmatpush1.msra.mxu0 0.0
    %188 = vmatprep.subr.mxu0 0.0
    %189 = vmatpush1.msra.mxu0 0.0
    %190 = vmatprep.subr.mxu0 0.0
    %191 = vmatpush1.msra.mxu0 0.0
    %192 = vmatprep.subr.mxu0 0.0
    %193 = vmatpush1.msra.mxu0 0.0
    %194 = vmatprep.subr.mxu0 0.0
    %195 = vmatpush1.msra.mxu0 0.0
    %196 = vmatprep.subr.mxu0 0.0
    %197 = vmatpush1.msra.mxu0 0.0
    %198 = vmatprep.subr.mxu0 0.0
    %199 = vmatpush1.msra.mxu0 0.0
    %200 = vmatprep.subr.mxu0 0.0
    %201 = vmatpush1.msra.mxu0 0.0
    %202 = vmatprep.subr.mxu0 0.0
    %203 = vmatpush1.msra.mxu0 0.0
    %204 = vmatprep.subr.mxu0 0.0
    %205 = vmatpush1.msra.mxu0 0.0
    %206 = vmatprep.subr.mxu0 0.0
    %207 = vmatpush1.msra.mxu0 0.0
    %208 = vmatprep.subr.mxu0 0.0
    %209 = vmatpush1.msra.mxu0 0.0
    %210 = vmatprep.subr.mxu0 0.0
    %211 = vmatpush1.msra.mxu0 0.0
    %212 = vmatprep.subr.mxu0 0.0
    %213 = vmatpush1.msra.mxu0 0.0
    %214 = vmatprep.subr.mxu0 0.0
    %215 = vmatpush1.msra.mxu0 0.0
    %216 = vmatprep.subr.mxu0 0.0
    %217 = vmatpush1.msra.mxu0 0.0
    %218 = vmatprep.subr.mxu0 0.0
    %219 = vmatpush1.msra.mxu0 0.0
    %220 = vmatprep.subr.mxu0 0.0
    %221 = vmatpush1.msra.mxu0 0.0
    %222 = vmatprep.subr.mxu0 0.0
    %223 = vmatpush1.msra.mxu0 0.0
    %224 = vmatprep.subr.mxu0 0.0
    %225 = vmatpush1.msra.mxu0 0.0
    %226 = vmatprep.subr.mxu0 0.0
    %227 = vmatpush1.msra.mxu0 0.0
    %228 = vmatprep.subr.mxu0 0.0
    %229 = vmatpush1.msra.mxu0 0.0
    %230 = vmatprep.subr.mxu0 0.0
    %231 = vmatpush1.msra.mxu0 0.0
    %232 = vmatprep.subr.mxu0 0.0
    %233 = vmatpush1.msra.mxu0 0.0
    %234 = vmatprep.subr.mxu0 0.0
    %235 = vmatpush1.msra.mxu0 0.0
    %236 = vmatprep.subr.mxu0 0.0
    %237 = vmatpush1.msra.mxu0 0.0
    %238 = vmatprep.subr.mxu0 0.0
    %239 = vmatpush1.msra.mxu0 0.0
    %240 = vmatprep.subr.mxu0 0.0
    %241 = vmatpush1.msra.mxu0 0.0
    %242 = vmatprep.subr.mxu0 0.0
    %243 = vmatpush1.msra.mxu0 0.0
    %244 = vmatprep.mubr.f32.mxu0 0.0
    %245 = vmatmul.mubr.f32.gmra.mrb[0].mxu0 %v178
    %v246 = vpop.f32.mrb[0].mxu0
    %v247 = vadd.f32 %v173, %v246
    %v248 = vpop.f32.mrb[0].mxu0
    %249 = vdwg.mxu0
    %v250 = vld [vmem:[%s4] sm:$0x1]
    %v252 = vlaneseq
    %v253 = vshrl.u32 %v252, 7
    %v254 = vsub.s32 0, %v253
    %v255 = vrot.slane %v250, %v254
    %v257 = vadd.f32 %v247, %v255
    %v258 = vmax.f32 %v257, 0.0
    %v259 = vld [vmem:[#allocation8] sm:$0xff]
    %v260 = vld [vmem:[#allocation8 + $0x8] sm:$0xff]
    %v261 = vld [vmem:[#allocation8 + $0x10] sm:$0xff]
    %v262 = vld [vmem:[#allocation8 + $0x18] sm:$0xff]
    %v263 = vld [vmem:[#allocation8 + $0x20] sm:$0xff]
    %v264 = vld [vmem:[#allocation8 + $0x28] sm:$0xff]
    %v265 = vld [vmem:[#allocation8 + $0x30] sm:$0xff]
    %v266 = vld [vmem:[#allocation8 + $0x38] sm:$0xff]
    %v267 = vld [vmem:[#allocation8 + $0x40] sm:$0xff]
    %v268 = vld [vmem:[#allocation8 + $0x48] sm:$0xff]
    %v269 = vld [vmem:[#allocation8 + $0x50] sm:$0xff]
    %v270 = vld [vmem:[#allocation8 + $0x58] sm:$0xff]
    %v271 = vld [vmem:[#allocation8 + $0x60] sm:$0xff]
    %v272 = vld [vmem:[#allocation8 + $0x68] sm:$0xff]
    %v273 = vld [vmem:[#allocation8 + $0x70] sm:$0xff]
    %v274 = vld [vmem:[#allocation8 + $0x78] sm:$0xff]
    %v275 = vld [vmem:[%s6] sm:$0x1]
    %v277 = vlaneseq
    %v278 = vshrl.u32 %v277, 7
    %v279 = vsub.s32 0, %v278
    %v280 = vrot.slane %v275, %v279
    %282 = vmatprep.subr.mxu0 0.0
    %283 = vmatpush1.msra.mxu0 %v259
    %284 = vmatprep.subr.mxu0 0.0
    %285 = vmatpush1.msra.mxu0 %v260
    %286 = vmatprep.subr.mxu0 0.0
    %287 = vmatpush1.msra.mxu0 %v261
    %288 = vmatprep.subr.mxu0 0.0
    %289 = vmatpush1.msra.mxu0 %v262
    %290 = vmatprep.subr.mxu0 0.0
    %291 = vmatpush1.msra.mxu0 %v263
    %292 = vmatprep.subr.mxu0 0.0
    %293 = vmatpush1.msra.mxu0 %v264
    %294 = vmatprep.subr.mxu0 0.0
    %295 = vmatpush1.msra.mxu0 %v265
    %296 = vmatprep.subr.mxu0 0.0
    %297 = vmatpush1.msra.mxu0 %v266
    %298 = vmatprep.subr.mxu0 0.0
    %299 = vmatpush1.msra.mxu0 %v267
    %300 = vmatprep.subr.mxu0 0.0
    %301 = vmatpush1.msra.mxu0 %v268
    %302 = vmatprep.subr.mxu0 0.0
    %303 = vmatpush1.msra.mxu0 %v269
    %304 = vmatprep.subr.mxu0 0.0
    %305 = vmatpush1.msra.mxu0 %v270
    %306 = vmatprep.subr.mxu0 0.0
    %307 = vmatpush1.msra.mxu0 %v271
    %308 = vmatprep.subr.mxu0 0.0
    %309 = vmatpush1.msra.mxu0 %v272
    %310 = vmatprep.subr.mxu0 0.0
    %311 = vmatpush1.msra.mxu0 %v273
    %312 = vmatprep.subr.mxu0 0.0
    %313 = vmatpush1.msra.mxu0 %v274
    %314 = vmatprep.subr.mxu0 0.0
    %315 = vmatpush1.msra.mxu0 0.0
    %316 = vmatprep.subr.mxu0 0.0
    %317 = vmatpush1.msra.mxu0 0.0
    %318 = vmatprep.subr.mxu0 0.0
    %319 = vmatpush1.msra.mxu0 0.0
    %320 = vmatprep.subr.mxu0 0.0
    %321 = vmatpush1.msra.mxu0 0.0
    %322 = vmatprep.subr.mxu0 0.0
    %323 = vmatpush1.msra.mxu0 0.0
    %324 = vmatprep.subr.mxu0 0.0
    %325 = vmatpush1.msra.mxu0 0.0
    %326 = vmatprep.subr.mxu0 0.0
    %327 = vmatpush1.msra.mxu0 0.0
    %328 = vmatprep.subr.mxu0 0.0
    %329 = vmatpush1.msra.mxu0 0.0
    %330 = vmatprep.subr.mxu0 0.0
    %331 = vmatpush1.msra.mxu0 0.0
    %332 = vmatprep.subr.mxu0 0.0
    %333 = vmatpush1.msra.mxu0 0.0
    %334 = vmatprep.subr.mxu0 0.0
    %335 = vmatpush1.msra.mxu0 0.0
    %336 = vmatprep.subr.mxu0 0.0
    %337 = vmatpush1.msra.mxu0 0.0
    %338 = vmatprep.subr.mxu0 0.0
    %339 = vmatpush1.msra.mxu0 0.0
    %340 = vmatprep.subr.mxu0 0.0
    %341 = vmatpush1.msra.mxu0 0.0
    %342 = vmatprep.subr.mxu0 0.0
    %343 = vmatpush1.msra.mxu0 0.0
    %344 = vmatprep.subr.mxu0 0.0
    %345 = vmatpush1.msra.mxu0 0.0
    %346 = vmatprep.mubr.f32.mxu0 0.0
    %347 = vmatmul.mubr.f32.gmra.mrb[0].mxu0 %v258
    %v348 = vpop.f32.mrb[0].mxu0
    %v349 = vadd.f32 %v280, %v348
    %v350 = vpop.f32.mrb[0].mxu0
    %351 = vdwg.mxu0
    %v352 = vmax.f32 %v349, 0.0
    %v353 = vld [vmem:[#allocation10] sm:$0xff]
    %v354 = vld [vmem:[#allocation10 + $0x8] sm:$0xff]
    %v355 = vld [vmem:[#allocation10 + $0x10] sm:$0xff]
    %v356 = vld [vmem:[#allocation10 + $0x18] sm:$0xff]
    %v357 = vld [vmem:[#allocation10 + $0x20] sm:$0xff]
    %v358 = vld [vmem:[#allocation10 + $0x28] sm:$0xff]
    %v359 = vld [vmem:[#allocation10 + $0x30] sm:$0xff]
    %v360 = vld [vmem:[#allocation10 + $0x38] sm:$0xff]
    %v361 = vld [vmem:[#allocation10 + $0x40] sm:$0xff]
    %v362 = vld [vmem:[#allocation10 + $0x48] sm:$0xff]
    %v363 = vld [vmem:[#allocation10 + $0x50] sm:$0xff]
    %v364 = vld [vmem:[#allocation10 + $0x58] sm:$0xff]
    %v365 = vld [vmem:[#allocation10 + $0x60] sm:$0xff]
    %v366 = vld [vmem:[#allocation10 + $0x68] sm:$0xff]
    %v367 = vld [vmem:[#allocation10 + $0x70] sm:$0xff]
    %v368 = vld [vmem:[#allocation10 + $0x78] sm:$0xff]
    %v369 = vld [vmem:[%s8] sm:$0x1]
    %v371 = vlaneseq
    %v372 = vshrl.u32 %v371, 7
    %v373 = vsub.s32 0, %v372
    %v374 = vrot.slane %v369, %v373
    %376 = vmatprep.subr.mxu0 0.0
    %377 = vmatpush1.msra.mxu0 %v353
    %378 = vmatprep.subr.mxu0 0.0
    %379 = vmatpush1.msra.mxu0 %v354
    %380 = vmatprep.subr.mxu0 0.0
    %381 = vmatpush1.msra.mxu0 %v355
    %382 = vmatprep.subr.mxu0 0.0
    %383 = vmatpush1.msra.mxu0 %v356
    %384 = vmatprep.subr.mxu0 0.0
    %385 = vmatpush1.msra.mxu0 %v357
    %386 = vmatprep.subr.mxu0 0.0
    %387 = vmatpush1.msra.mxu0 %v358
    %388 = vmatprep.subr.mxu0 0.0
    %389 = vmatpush1.msra.mxu0 %v359
    %390 = vmatprep.subr.mxu0 0.0
    %391 = vmatpush1.msra.mxu0 %v360
    %392 = vmatprep.subr.mxu0 0.0
    %393 = vmatpush1.msra.mxu0 %v361
    %394 = vmatprep.subr.mxu0 0.0
    %395 = vmatpush1.msra.mxu0 %v362
    %396 = vmatprep.subr.mxu0 0.0
    %397 = vmatpush1.msra.mxu0 %v363
    %398 = vmatprep.subr.mxu0 0.0
    %399 = vmatpush1.msra.mxu0 %v364
    %400 = vmatprep.subr.mxu0 0.0
    %401 = vmatpush1.msra.mxu0 %v365
    %402 = vmatprep.subr.mxu0 0.0
    %403 = vmatpush1.msra.mxu0 %v366
    %404 = vmatprep.subr.mxu0 0.0
    %405 = vmatpush1.msra.mxu0 %v367
    %406 = vmatprep.subr.mxu0 0.0
    %407 = vmatpush1.msra.mxu0 %v368
    %408 = vmatprep.subr.mxu0 0.0
    %409 = vmatpush1.msra.mxu0 0.0
    %410 = vmatprep.subr.mxu0 0.0
    %411 = vmatpush1.msra.mxu0 0.0
    %412 = vmatprep.subr.mxu0 0.0
    %413 = vmatpush1.msra.mxu0 0.0
    %414 = vmatprep.subr.mxu0 0.0
    %415 = vmatpush1.msra.mxu0 0.0
    %416 = vmatprep.subr.mxu0 0.0
    %417 = vmatpush1.msra.mxu0 0.0
    %418 = vmatprep.subr.mxu0 0.0
    %419 = vmatpush1.msra.mxu0 0.0
    %420 = vmatprep.subr.mxu0 0.0
    %421 = vmatpush1.msra.mxu0 0.0
    %422 = vmatprep.subr.mxu0 0.0
    %423 = vmatpush1.msra.mxu0 0.0
    %424 = vmatprep.subr.mxu0 0.0
    %425 = vmatpush1.msra.mxu0 0.0
    %426 = vmatprep.subr.mxu0 0.0
    %427 = vmatpush1.msra.mxu0 0.0
    %428 = vmatprep.subr.mxu0 0.0
    %429 = vmatpush1.msra.mxu0 0.0
    %430 = vmatprep.subr.mxu0 0.0
    %431 = vmatpush1.msra.mxu0 0.0
    %432 = vmatprep.subr.mxu0 0.0
    %433 = vmatpush1.msra.mxu0 0.0
    %434 = vmatprep.subr.mxu0 0.0
    %435 = vmatpush1.msra.mxu0 0.0
    %436 = vmatprep.subr.mxu0 0.0
    %437 = vmatpush1.msra.mxu0 0.0
    %438 = vmatprep.subr.mxu0 0.0
    %439 = vmatpush1.msra.mxu0 0.0
    %440 = vmatprep.mubr.f32.mxu0 0.0
    %441 = vmatmul.mubr.f32.gmra.mrb[0].mxu0 %v352
    %v442 = vpop.f32.mrb[0].mxu0
    %v443 = vadd.f32 %v374, %v442
    %v444 = vpop.f32.mrb[0].mxu0
    %445 = vdwg.mxu0
    %446 = vst [vmem:[#allocation11] sm:$0xff] %v443
    // Predicated region
    $region58: #{tpu_custom_call.1} parent=1 // pred_check
      _
    $region59: #{tpu_custom_call.1} parent=1 // pred_check_branch
      %448 = sbr.rel (0) target = $region61
    $region60: #{tpu_custom_call.1} parent=1 // pred_region
      %s450 = ssub.s32 128, 128
      %451 = vsyncadd [#allocation4], %s450
      %s453 = sshll.u32 [#allocation11], 4
      %s454 = int_to_ptr.vmem [resolvable:$true] %s453
      %456 = dma.vmem_to_hbm [thread:$0]  %s454, 128, %s9, [#allocation4]
    $region61: #{tpu_custom_call.1} parent=1 // pred_fallthru
      _
    // Predicated region
    $region62: #{tpu_custom_call.1} parent=1 // pred_check
      _
    $region63: #{tpu_custom_call.1} parent=1 // pred_check_branch
      %458 = sbr.rel (0) target = $region65
    $region64: #{tpu_custom_call.1} parent=1 // pred_region
      %459 = dma.done [#allocation4], 128
    $region65: #{tpu_custom_call.1} parent=1 // pred_fallthru
      _
    %460 = vsyncpa [#allocation3], 1
    %461 = vsyncpa [#allocation6], 1
    %462 = vsyncpa [#allocation9], 1
    %463 = vsyncpa [#allocation4], 1

</llo_original>
